<compile_context>
chip_gen: v5e
topology: v5e:2x2
jax: 0.10.0
libtpu: 0.0.40
codegen_flags: <defaults>
</compile_context>

<pallas_src>
import functools

import jax
import jax.numpy as jnp
from jax.experimental import pallas as pl
from jax.experimental.pallas import tpu as pltpu


def _round_up(n: int, m: int) -> int:
    return ((n + m - 1) // m) * m


def kan_kernel(x_ref, w1_ref, b1_ref, w2_ref, b2_ref, o_ref):
    # fc1: x @ W1 (MXU, f32 accumulate), bias-add + ReLU in f32 (VPU),
    # fc2: h @ W2 (MXU, f32 accumulate), bias-add, cast back to output dtype.
    h = jnp.dot(x_ref[...], w1_ref[...], preferred_element_type=jnp.float32)
    h = jnp.maximum(h + b1_ref[...], 0.0)
    y = jnp.dot(h.astype(w2_ref.dtype), w2_ref[...],
                preferred_element_type=jnp.float32)
    o_ref[...] = (y + b2_ref[...]).astype(o_ref.dtype)


@functools.partial(jax.jit, static_argnames=("tm", "compute_dtype"))
def kan_forward(x, w1, b1, w2, b2, *, tm=None, compute_dtype=None):
    """Fused Linear -> ReLU -> Linear (KAN forward).

    x : (B, D_in)
    w1: (D_in, D_hidden), b1: (1, D_hidden)
    w2: (D_hidden, D_out), b2: (1, D_out)
    compute_dtype: optional dtype (e.g. jnp.bfloat16) for the matmul operands;
                   accumulation and elementwise stay f32.
    """
    B, D_in = x.shape
    D_hid = w1.shape[1]
    D_out = w2.shape[1]
    out_dtype = x.dtype

    # ---- lane-dense padding: feature dims -> multiples of 128 -------------
    Dp_in = _round_up(D_in, 128)
    Dp_hid = _round_up(D_hid, 128)
    Dp_out = _round_up(D_out, 128)

    # ---- batch tile: capped, multiple of 8, >=2 grid steps when possible --
    if tm is None:
        if B <= 8:
            tm = 8
        else:
            tm = min(512, _round_up(pl.cdiv(B, 2), 8))
    tm = max(8, _round_up(tm, 8))
    Bp = _round_up(max(B, 8), tm)

    mm_dtype = x.dtype if compute_dtype is None else jnp.dtype(compute_dtype)

    # Zero-padding keeps the math exact: padded x columns hit zero W1 rows,
    # padded hidden lanes get zero bias -> relu(0) = 0 -> hit zero W2 rows,
    # padded output lanes are zero and are sliced off below.
    x_p = jnp.pad(x, ((0, Bp - B), (0, Dp_in - D_in))).astype(mm_dtype)
    w1_p = jnp.pad(w1, ((0, Dp_in - D_in), (0, Dp_hid - D_hid))).astype(mm_dtype)
    w2_p = jnp.pad(w2, ((0, Dp_hid - D_hid), (0, Dp_out - D_out))).astype(mm_dtype)
    b1_p = jnp.pad(b1, ((0, 0), (0, Dp_hid - D_hid))).astype(jnp.float32)
    b2_p = jnp.pad(b2, ((0, 0), (0, Dp_out - D_out))).astype(jnp.float32)

    grid = (Bp // tm,)

    # ---- VMEM budget (double-buffered inputs/outputs + f32 intermediates) -
    mm_sz = jnp.dtype(mm_dtype).itemsize
    out_sz = jnp.dtype(out_dtype).itemsize
    est_bytes = 2 * (
        tm * Dp_in * mm_sz            # x tile
        + Dp_in * Dp_hid * mm_sz      # W1
        + Dp_hid * 4                  # b1
        + Dp_hid * Dp_out * mm_sz     # W2
        + Dp_out * 4                  # b2
        + tm * Dp_out * out_sz        # output tile
    ) + tm * Dp_hid * 4 + tm * Dp_out * 4   # f32 intermediates h, y
    vmem_limit = int(min(64 * 2**20, max(4 * 2**20, 2 * est_bytes)))

    cost = pl.CostEstimate(
        flops=2 * Bp * (Dp_in * Dp_hid + Dp_hid * Dp_out),
        transcendentals=0,
        bytes_accessed=(x_p.size * mm_sz + w1_p.size * mm_sz + b1_p.size * 4
                        + w2_p.size * mm_sz + b2_p.size * 4
                        + Bp * Dp_out * out_sz),
    )

    out_p = pl.pallas_call(
        kan_kernel,
        out_shape=jax.ShapeDtypeStruct((Bp, Dp_out), out_dtype),
        grid_spec=pltpu.PrefetchScalarGridSpec(
            num_scalar_prefetch=0,
            grid=grid,
            in_specs=[
                pl.BlockSpec((tm, Dp_in), lambda i: (i, 0)),
                pl.BlockSpec((Dp_in, Dp_hid), lambda i: (0, 0)),
                pl.BlockSpec((1, Dp_hid), lambda i: (0, 0)),
                pl.BlockSpec((Dp_hid, Dp_out), lambda i: (0, 0)),
                pl.BlockSpec((1, Dp_out), lambda i: (0, 0)),
            ],
            out_specs=pl.BlockSpec((tm, Dp_out), lambda i: (i, 0)),
        ),
        compiler_params=pltpu.CompilerParams(
            dimension_semantics=("parallel",),
            vmem_limit_bytes=vmem_limit,
        ),
        cost_estimate=cost,
    )(x_p, w1_p, b1_p, w2_p, b2_p)

    return out_p[:B, :D_out]


def init_linear_params(key, fan_in, fan_out, dtype=jnp.float32):
    # Mimic PyTorch nn.Linear default init: U(-1/sqrt(fan_in), 1/sqrt(fan_in)).
    kw, kb = jax.random.split(key)
    bound = 1.0 / jnp.sqrt(jnp.asarray(fan_in, dtype))
    # PyTorch weight is (out, in); we store transposed (in, out) for x @ W.
    w = jax.random.uniform(kw, (fan_in, fan_out), dtype, -bound, bound)
    b = jax.random.uniform(kb, (1, fan_out), dtype, -bound, bound)
    return w, b


if __name__ == "__main__":
    # KAN(width=[32, 64, 16], grid=5, k=3) -> fc1: 32->64, fc2: 64->16
    width = [32, 64, 16]

    key = jax.random.PRNGKey(0)
    kx, k1, k2, kx2 = jax.random.split(key, 4)

    w1, b1 = init_linear_params(k1, width[0], width[1])
    w2, b2 = init_linear_params(k2, width[1], width[2])

    # Case 1: small batch (matches the module's tiny shipped size), f32 path.
    B = 8
    x = jax.random.normal(kx, (B, width[0]), jnp.float32)
    out = jax.block_until_ready(kan_forward(x, w1, b1, w2, b2))
    ref = jnp.maximum(x @ w1 + b1, 0.0) @ w2 + b2
    assert out.shape == (B, width[2])
    assert jnp.allclose(out, ref, atol=1e-5, rtol=1e-5)

    # Case 2: larger batch exercises the tiled (>=2 step) parallel grid.
    B2 = 64
    x2 = jax.random.normal(kx2, (B2, width[0]), jnp.float32)
    out2 = jax.block_until_ready(kan_forward(x2, w1, b1, w2, b2))
    ref2 = jnp.maximum(x2 @ w1 + b1, 0.0) @ w2 + b2
    assert out2.shape == (B2, width[2])
    assert jnp.allclose(out2, ref2, atol=1e-5, rtol=1e-5)

    # Case 3: bf16 MXU path (f32 accumulation + f32 elementwise), loose tol.
    out_bf16 = jax.block_until_ready(
        kan_forward(x2, w1, b1, w2, b2, compute_dtype=jnp.bfloat16))
    assert out_bf16.shape == (B2, width[2])
    assert jnp.allclose(out_bf16, ref2, atol=3e-2, rtol=3e-2)

    print("KERNEL_OK")
</pallas_src>

<mosaic_0001>
module attributes {stable_mosaic.version = 11 : i64} {
  func.func @kan_kernel(%arg0: i32, %arg1: memref<8x128xf32, #tpu.memory_space<vmem>>, %arg2: memref<128x128xf32, #tpu.memory_space<vmem>>, %arg3: memref<1x128xf32, #tpu.memory_space<vmem>>, %arg4: memref<128x128xf32, #tpu.memory_space<vmem>>, %arg5: memref<1x128xf32, #tpu.memory_space<vmem>>, %arg6: memref<8x128xf32, #tpu.memory_space<vmem>>) attributes {dimension_semantics = [#tpu.dimension_semantics<parallel>], iteration_bounds = array<i64: 1>, scalar_prefetch = 0 : i64, scratch_operands = 0 : i64, tpu.core_type = #tpu.core_type<tc>, window_params = [{transform_indices = @transform_0, window_bounds = array<i64: 8, 128>}, {pipeline_mode = #tpu.pipeline_mode<synchronous>, transform_indices = @transform_1, window_bounds = array<i64: 128, 128>}, {pipeline_mode = #tpu.pipeline_mode<synchronous>, transform_indices = @transform_2, window_bounds = array<i64: 1, 128>}, {pipeline_mode = #tpu.pipeline_mode<synchronous>, transform_indices = @transform_3, window_bounds = array<i64: 128, 128>}, {pipeline_mode = #tpu.pipeline_mode<synchronous>, transform_indices = @transform_4, window_bounds = array<i64: 1, 128>}, {transform_indices = @transform_5, window_bounds = array<i64: 8, 128>}]} {
    %c0 = arith.constant 0 : index
    %c0_0 = arith.constant 0 : index
    %0 = vector.load %arg1[%c0, %c0_0] : memref<8x128xf32, #tpu.memory_space<vmem>>, vector<8x128xf32>
    %c0_1 = arith.constant 0 : index
    %c0_2 = arith.constant 0 : index
    %1 = vector.load %arg2[%c0_1, %c0_2] : memref<128x128xf32, #tpu.memory_space<vmem>>, vector<128x128xf32>
    %cst = arith.constant dense<0.000000e+00> : vector<8x128xf32>
    %2 = tpu.matmul %0, %1, %cst {dimension_numbers = #tpu.dot_dimension_numbers<[1], [0], [0], [1], [0, 0, 1, 1], [], []>} : vector<8x128xf32>, vector<128x128xf32>, vector<8x128xf32> -> vector<8x128xf32>
    %c0_3 = arith.constant 0 : index
    %c0_4 = arith.constant 0 : index
    %3 = vector.load %arg3[%c0_3, %c0_4] : memref<1x128xf32, #tpu.memory_space<vmem>>, vector<1x128xf32>
    %4 = vector.broadcast %3 : vector<1x128xf32> to vector<8x128xf32>
    %5 = arith.addf %2, %4 : vector<8x128xf32>
    %cst_5 = arith.constant 0.000000e+00 : f32
    %6 = vector.broadcast %cst_5 : f32 to vector<8x128xf32>
    %7 = arith.maximumf %5, %6 : vector<8x128xf32>
    %c0_6 = arith.constant 0 : index
    %c0_7 = arith.constant 0 : index
    %8 = vector.load %arg4[%c0_6, %c0_7] : memref<128x128xf32, #tpu.memory_space<vmem>>, vector<128x128xf32>
    %cst_8 = arith.constant dense<0.000000e+00> : vector<8x128xf32>
    %9 = tpu.matmul %7, %8, %cst_8 {dimension_numbers = #tpu.dot_dimension_numbers<[1], [0], [0], [1], [0, 0, 1, 1], [], []>} : vector<8x128xf32>, vector<128x128xf32>, vector<8x128xf32> -> vector<8x128xf32>
    %c0_9 = arith.constant 0 : index
    %c0_10 = arith.constant 0 : index
    %10 = vector.load %arg5[%c0_9, %c0_10] : memref<1x128xf32, #tpu.memory_space<vmem>>, vector<1x128xf32>
    %11 = vector.broadcast %10 : vector<1x128xf32> to vector<8x128xf32>
    %12 = arith.addf %9, %11 : vector<8x128xf32>
    %c0_11 = arith.constant 0 : index
    %c0_12 = arith.constant 0 : index
    %13 = vector.load %arg6[%c0_11, %c0_12] : memref<8x128xf32, #tpu.memory_space<vmem>>, vector<8x128xf32>
    tpu.vector_store %arg6[%c0_11, %c0_12], %12 {strides = array<i32>} : memref<8x128xf32, #tpu.memory_space<vmem>>, vector<8x128xf32>,
    return
  }
  func.func @transform_0(%arg0: i32) -> (i32, i32) {
    %c0_i32 = arith.constant 0 : i32
    %c0_i32_0 = arith.constant 0 : i32
    return %arg0, %c0_i32 : i32, i32
  }
  func.func @transform_1(%arg0: i32) -> (i32, i32) {
    %c0_i32 = arith.constant 0 : i32
    %c0_i32_0 = arith.constant 0 : i32
    %c0_i32_1 = arith.constant 0 : i32
    return %c0_i32, %c0_i32_0 : i32, i32
  }
  func.func @transform_2(%arg0: i32) -> (i32, i32) {
    %c0_i32 = arith.constant 0 : i32
    %c0_i32_0 = arith.constant 0 : i32
    %c0_i32_1 = arith.constant 0 : i32
    return %c0_i32, %c0_i32_0 : i32, i32
  }
  func.func @transform_3(%arg0: i32) -> (i32, i32) {
    %c0_i32 = arith.constant 0 : i32
    %c0_i32_0 = arith.constant 0 : i32
    %c0_i32_1 = arith.constant 0 : i32
    return %c0_i32, %c0_i32_0 : i32, i32
  }
  func.func @transform_4(%arg0: i32) -> (i32, i32) {
    %c0_i32 = arith.constant 0 : i32
    %c0_i32_0 = arith.constant 0 : i32
    %c0_i32_1 = arith.constant 0 : i32
    return %c0_i32, %c0_i32_0 : i32, i32
  }
  func.func @transform_5(%arg0: i32) -> (i32, i32) {
    %c0_i32 = arith.constant 0 : i32
    %c0_i32_0 = arith.constant 0 : i32
    return %arg0, %c0_i32 : i32, i32
  }
}

</mosaic_0001>

<llo_original>
// kernel: kan_forward.1
$region0: #{kan_forward.1}
  #allocation0 [shape = 'u32[]', space=smem, size = 0x4, offset = 0x4, fixed_abs, tag = 'smem constant byte address 0x4 - core index']
  #allocation1 [shape = 'u32[72,128]{1,0:T(1,128)}', space=vmem, size = 0x9000, scoped, tag = 'internal scratch']
  %s0 = inlined_call_operand.vmem [shape: f32[8,128], index: 0, kind: input, shape index: {}]
  %s1 = inlined_call_operand.vmem [shape: f32[128,128], index: 1, kind: input, shape index: {}]
  %s2 = inlined_call_operand.vmem [shape: f32[1,128], index: 2, kind: input, shape index: {}]
  %s3 = inlined_call_operand.vmem [shape: f32[128,128], index: 3, kind: input, shape index: {}]
  %s4 = inlined_call_operand.vmem [shape: f32[1,128], index: 4, kind: input, shape index: {}]
  %s5 = inlined_call_operand.hbm [shape: f32[8,128], index: 5, kind: output, shape index: {}]
  %s6 = sld [smem:[#allocation0]]
  $region30: #{kan_forward.1} parent=0
    _
  %s8 = ssub.s32 1, %s6
  %s9 = scalar_select 0, %s8, %s6
  $region1: #{kan_forward.1} parent=0
    #allocation2 [shape = 'u8[4096]{0}', space=vmem, size = 0x1000, scoped, tag = 'output window, operand 0, single buffered']
    #allocation3 [shape = 's32[1]{0}', space=sflag, size = 0x4, scoped, tag = 'scoped memory for kan_forward.1']
    %10 = vsyncpa [#allocation3], 0
    // Predicated region
    $region2: #{kan_forward.1} parent=1 // pred_check
      _
    $region3: #{kan_forward.1} parent=1 // pred_check_branch
      %12 = sbr.rel (0) target = $region5
    $region4: #{kan_forward.1} parent=1 // pred_region
      _
    $region5: #{kan_forward.1} parent=1 // pred_fallthru
      _
    // Predicated region
    $region6: #{kan_forward.1} parent=1 // pred_check
      _
    $region7: #{kan_forward.1} parent=1 // pred_check_branch
      %14 = sbr.rel (0) target = $region9
    $region8: #{kan_forward.1} parent=1 // pred_region
      _
    $region9: #{kan_forward.1} parent=1 // pred_fallthru
      _
    // Predicated region
    $region10: #{kan_forward.1} parent=1 // pred_check
      _
    $region11: #{kan_forward.1} parent=1 // pred_check_branch
      %16 = sbr.rel (0) target = $region13
    $region12: #{kan_forward.1} parent=1 // pred_region
      _
    $region13: #{kan_forward.1} parent=1 // pred_fallthru
      _
    // Predicated region
    $region14: #{kan_forward.1} parent=1 // pred_check
      _
    $region15: #{kan_forward.1} parent=1 // pred_check_branch
      %18 = sbr.rel (0) target = $region17
    $region16: #{kan_forward.1} parent=1 // pred_region
      _
    $region17: #{kan_forward.1} parent=1 // pred_fallthru
      _
    // Predicated region
    $region18: #{kan_forward.1} parent=1 // pred_check
      _
    $region19: #{kan_forward.1} parent=1 // pred_check_branch
      %20 = sbr.rel (0) target = $region21
    $region20: #{kan_forward.1} parent=1 // pred_region
      _
    $region21: #{kan_forward.1} parent=1 // pred_fallthru
      _
    %v21 = vld [vmem:[%s0] sm:$0xff]
    %v22 = vld [vmem:[%s1] sm:$0xff]
    %v23 = vld [vmem:[%s1 + $0x8] sm:$0xff]
    %v24 = vld [vmem:[%s1 + $0x10] sm:$0xff]
    %v25 = vld [vmem:[%s1 + $0x18] sm:$0xff]
    %v26 = vld [vmem:[%s1 + $0x20] sm:$0xff]
    %v27 = vld [vmem:[%s1 + $0x28] sm:$0xff]
    %v28 = vld [vmem:[%s1 + $0x30] sm:$0xff]
    %v29 = vld [vmem:[%s1 + $0x38] sm:$0xff]
    %v30 = vld [vmem:[%s1 + $0x40] sm:$0xff]
    %v31 = vld [vmem:[%s1 + $0x48] sm:$0xff]
    %v32 = vld [vmem:[%s1 + $0x50] sm:$0xff]
    %v33 = vld [vmem:[%s1 + $0x58] sm:$0xff]
    %v34 = vld [vmem:[%s1 + $0x60] sm:$0xff]
    %v35 = vld [vmem:[%s1 + $0x68] sm:$0xff]
    %v36 = vld [vmem:[%s1 + $0x70] sm:$0xff]
    %v37 = vld [vmem:[%s1 + $0x78] sm:$0xff]
    %v38 = vld [vmem:[%s2] sm:$0x1]
    %v40 = vperm.slane %v38, 0
    %42 = vmatpush.msra.mxu0 %v37
    %43 = vmatpush.msra.mxu0 %v36
    %44 = vmatpush.msra.mxu0 %v35
    %45 = vmatpush.msra.mxu0 %v34
    %46 = vmatpush.msra.mxu0 %v33
    %47 = vmatpush.msra.mxu0 %v32
    %48 = vmatpush.msra.mxu0 %v31
    %49 = vmatpush.msra.mxu0 %v30
    %50 = vmatpush.msra.mxu0 %v29
    %51 = vmatpush.msra.mxu0 %v28
    %52 = vmatpush.msra.mxu0 %v27
    %53 = vmatpush.msra.mxu0 %v26
    %54 = vmatpush.msra.mxu0 %v25
    %55 = vmatpush.msra.mxu0 %v24
    %56 = vmatpush.msra.mxu0 %v23
    %57 = vmatpush.msra.mxu0 %v22
    %58 = vmatmul.f32.gmra.mxu0 %v21
    %v59 = vpop.f32.mrf.mxu0
    %v60 = vadd.f32 %v40, %v59
    %61 = vdwg.mxu0
    %v62 = vmax.f32 %v60, 0.0
    %v63 = vld [vmem:[%s3] sm:$0xff]
    %v64 = vld [vmem:[%s3 + $0x8] sm:$0xff]
    %v65 = vld [vmem:[%s3 + $0x10] sm:$0xff]
    %v66 = vld [vmem:[%s3 + $0x18] sm:$0xff]
    %v67 = vld [vmem:[%s3 + $0x20] sm:$0xff]
    %v68 = vld [vmem:[%s3 + $0x28] sm:$0xff]
    %v69 = vld [vmem:[%s3 + $0x30] sm:$0xff]
    %v70 = vld [vmem:[%s3 + $0x38] sm:$0xff]
    %v71 = vld [vmem:[%s3 + $0x40] sm:$0xff]
    %v72 = vld [vmem:[%s3 + $0x48] sm:$0xff]
    %v73 = vld [vmem:[%s3 + $0x50] sm:$0xff]
    %v74 = vld [vmem:[%s3 + $0x58] sm:$0xff]
    %v75 = vld [vmem:[%s3 + $0x60] sm:$0xff]
    %v76 = vld [vmem:[%s3 + $0x68] sm:$0xff]
    %v77 = vld [vmem:[%s3 + $0x70] sm:$0xff]
    %v78 = vld [vmem:[%s3 + $0x78] sm:$0xff]
    %v79 = vld [vmem:[%s4] sm:$0x1]
    %v81 = vperm.slane %v79, 0
    %83 = vmatpush.msra.mxu0 %v78
    %84 = vmatpush.msra.mxu0 %v77
    %85 = vmatpush.msra.mxu0 %v76
    %86 = vmatpush.msra.mxu0 %v75
    %87 = vmatpush.msra.mxu0 %v74
    %88 = vmatpush.msra.mxu0 %v73
    %89 = vmatpush.msra.mxu0 %v72
    %90 = vmatpush.msra.mxu0 %v71
    %91 = vmatpush.msra.mxu0 %v70
    %92 = vmatpush.msra.mxu0 %v69
    %93 = vmatpush.msra.mxu0 %v68
    %94 = vmatpush.msra.mxu0 %v67
    %95 = vmatpush.msra.mxu0 %v66
    %96 = vmatpush.msra.mxu0 %v65
    %97 = vmatpush.msra.mxu0 %v64
    %98 = vmatpush.msra.mxu0 %v63
    %99 = vmatmul.f32.gmra.mxu0 %v62
    %v100 = vpop.f32.mrf.mxu0
    %v101 = vadd.f32 %v81, %v100
    %102 = vdwg.mxu0
    %103 = vst [vmem:[#allocation2] sm:$0xff] %v101
    // Predicated region
    $region22: #{kan_forward.1} parent=1 // pred_check
      _
    $region23: #{kan_forward.1} parent=1 // pred_check_branch
      %105 = sbr.rel (0) target = $region25
    $region24: #{kan_forward.1} parent=1 // pred_region
      %107 = vsyncadd [#allocation3], 0
      %s109 = sshll.u32 [#allocation2], 4
      %s110 = int_to_ptr.vmem [resolvable:$true] %s109
      %s111 = sshll.u32 %s5, 4
      %s112 = int_to_ptr.hbm [resolvable:$true] %s111
      %114 = dma.vmem_to_hbm [thread:$0]  %s110, 128, %s112, [#allocation3]
    $region25: #{kan_forward.1} parent=1 // pred_fallthru
      _
    // Predicated region
    $region26: #{kan_forward.1} parent=1 // pred_check
      _
    $region27: #{kan_forward.1} parent=1 // pred_check_branch
      %116 = sbr.rel (0) target = $region29
    $region28: #{kan_forward.1} parent=1 // pred_region
      %118 = dma.done [#allocation3], 128
    $region29: #{kan_forward.1} parent=1 // pred_fallthru
      _
    %119 = vsyncpa [#allocation3], 1

</llo_original>
